<compile_context>
chip_gen: v7x
topology: tpu7x:2x2x1
jax: 0.10.0
libtpu: 0.0.40
codegen_flags: <defaults>
</compile_context>

<pallas_src>
import jax
import jax.numpy as jnp
from jax.experimental import pallas as pl
from jax.experimental.pallas import tpu as pltpu


# ~3 MiB f32 output block per grid step. Conservative all-generation choice:
# double-buffered (in + out) footprint ~7.5 MiB < v5e 16 MiB scoped default,
# < v6e/v7x 32 MiB scoped default (v7x physical VMEM is only 64 MiB/TC).
# TODO(synk): per-generation sweep (v6e tolerates 4-8 MiB blocks if
# vmem_limit_bytes is raised); kept conservative here.
_TARGET_OUT_BLOCK_BYTES = 3 * 1024 * 1024


def _scale_u8_kernel(x_ref, o_ref):
    # uint8 -> f32 cast, multiply by 1/255 (<= 1 ulp from true /255).
    # Math in f32; cast to the output dtype only on the final store so
    # bf16 output works on all gens (v5e has no bf16 VALU - irrelevant here).
    o_ref[...] = (x_ref[...].astype(jnp.float32) * (1.0 / 255.0)).astype(o_ref.dtype)


def _pick_lane(n: int):
    """Largest lane width (multiple of 128) that divides n, else None."""
    for lane in (2048, 1024, 512, 256, 128):
        if n % lane == 0:
            return lane
    return None


def _pick_tile_rows(rows: int, lane: int, out_itemsize: int) -> int:
    """Row-tile height: multiple of 32 (u8 sublane packing), ~3 MiB output
    block, >= 2 grid steps when possible (v7x megacore), preferring a divisor
    of `rows` so every store stays full-sublane / full-lane."""
    if rows < 64:
        return rows  # single full-extent block; too small to split usefully
    target = max(32, _TARGET_OUT_BLOCK_BYTES // (lane * out_itemsize))
    # Guarantee at least 2 grid steps so ("parallel",) can use both v7x TCs.
    target = min(target, rows // 2)
    target = max(32, (target // 32) * 32)
    # Prefer a tile height that divides rows: no masked trailing block.
    for tr in range(target, 31, -32):
        if rows % tr == 0:
            return tr
    return target  # masked trailing block; still correct


def _pallas_scale(flat_u8: jax.Array, rows: int, lane: int, tr: int, out_dtype):
    n = rows * lane
    out_itemsize = jnp.dtype(out_dtype).itemsize
    x2d = flat_u8.reshape(rows, lane)
    return pl.pallas_call(
        _scale_u8_kernel,
        grid=(pl.cdiv(rows, tr),),
        in_specs=[pl.BlockSpec((tr, lane), lambda i: (i, 0))],
        out_specs=pl.BlockSpec((tr, lane), lambda i: (i, 0)),
        out_shape=jax.ShapeDtypeStruct((rows, lane), out_dtype),
        compiler_params=pltpu.CompilerParams(
            dimension_semantics=("parallel",)),
        cost_estimate=pl.CostEstimate(
            flops=n, transcendentals=0,
            bytes_accessed=n * (1 + out_itemsize)),
    )(x2d)


def preprocess(x_hwc_u8: jax.Array, *, out_dtype=jnp.float32,
               channels_last: bool = False,
               min_pallas_elements: int = 0) -> jax.Array:
    """PreProcess.forward equivalent: HWC uint8 image -> float image in [0,1].

    channels_last=False (default) matches kornia.image_to_tensor(keepdim=True)
    and returns CHW.  channels_last=True returns HWC and skips the permute
    entirely (zero extra HBM passes) for consumers that accept NHWC.
    out_dtype=bfloat16 halves the dominant (write) HBM stream if tolerated.
    min_pallas_elements: below this element count use XLA's fused
    convert*scale (custom-call overhead dominates for tiny single images).
    """
    assert x_hwc_u8.ndim == 3, "expected an HWC image"
    # TODO(synk): 2-D (grayscale) PIL inputs not handled in this kernel.
    H, W, C = x_hwc_u8.shape
    n = H * W * C
    out_itemsize = jnp.dtype(out_dtype).itemsize

    if n < min_pallas_elements:
        # Tiny image: XLA's fused convert*scale is competitive; skip Pallas.
        out = x_hwc_u8.astype(jnp.float32) * (1.0 / 255.0)
        if not channels_last:
            out = jnp.transpose(out, (2, 0, 1))
        return out.astype(out_dtype)

    if channels_last:
        # Preferred (review): no permute at all; the uint8 buffer is already
        # contiguous in the output (HWC) order.
        flat = x_hwc_u8.reshape(-1)
        out_shape = (H, W, C)
        nat_rows, nat_lane = H, W * C              # natural 2-D view fallback
    else:
        # kornia.image_to_tensor(keepdim=True) == HWC -> CHW permute, done
        # once in XLA on the *uint8* buffer (2n extra HBM bytes).
        # TODO(synk): fuse this permute into the kernel once the (tile, C) ->
        # (C, tile) in-kernel relayout is bundle-verified not to be XLU-bound.
        flat = jnp.transpose(x_hwc_u8, (2, 0, 1)).reshape(-1)
        out_shape = (C, H, W)
        nat_rows, nat_lane = C * H, W              # natural 2-D view fallback

    lane = _pick_lane(n)
    if lane is not None:
        rows = n // lane                           # fully lane-dense view
    else:
        # n not divisible by 128: single pass on the buffer's natural 2-D view
        # (full-extent last dim => legal BlockSpec, masked stores).  No pad
        # pass, no output slice/copy.
        rows, lane = nat_rows, nat_lane

    tr = _pick_tile_rows(rows, lane, out_itemsize)
    out2d = _pallas_scale(flat, rows, lane, tr, out_dtype)
    return out2d.reshape(out_shape)       # contiguous reshape: no extra pass


if __name__ == "__main__":
    key = jax.random.PRNGKey(0)

    def ref_chw(x):
        return jnp.transpose(x, (2, 0, 1)).astype(jnp.float32) / 255.0

    # 1) Small HWC uint8 "PIL image", lane-dense main path, CHW f32 output.
    x1 = jax.random.randint(key, (16, 16, 3), 0, 256, dtype=jnp.int32).astype(jnp.uint8)
    o1 = jax.block_until_ready(preprocess(x1))
    assert o1.shape == (3, 16, 16), o1.shape
    assert o1.dtype == jnp.float32, o1.dtype
    assert jnp.allclose(o1, ref_chw(x1), atol=1e-6), "mismatch (main path)"

    # 2) Element count not divisible by 128 -> natural-view fallback
    #    (single pass, masked stores, no pad / no output slice).
    x2 = jax.random.randint(jax.random.PRNGKey(0), (17, 9, 3), 0, 256,
                            dtype=jnp.int32).astype(jnp.uint8)
    o2 = jax.block_until_ready(preprocess(x2))
    assert o2.shape == (3, 17, 9), o2.shape
    assert jnp.allclose(o2, ref_chw(x2), atol=1e-6), "mismatch (fallback path)"

    # 3) channels_last (zero-permute) + bfloat16 output (halved write stream).
    o3 = jax.block_until_ready(
        preprocess(x1, out_dtype=jnp.bfloat16, channels_last=True))
    assert o3.shape == (16, 16, 3) and o3.dtype == jnp.bfloat16
    assert jnp.allclose(o3.astype(jnp.float32),
                        x1.astype(jnp.float32) / 255.0, atol=5e-3), \
        "mismatch (channels_last bf16)"

    # 4) Realistic image size -> multi-step grid (tile picker + >=2 steps for
    #    v7x megacore sharding).
    x4 = jax.random.randint(jax.random.PRNGKey(0), (224, 224, 3), 0, 256,
                            dtype=jnp.int32).astype(jnp.uint8)
    o4 = jax.block_until_ready(preprocess(x4))
    assert o4.shape == (3, 224, 224), o4.shape
    assert jnp.allclose(o4, ref_chw(x4), atol=1e-6), "mismatch (multi-tile)"

    # 5) Tiny-input pure-XLA fallback path (custom-call overhead not worth it).
    o5 = jax.block_until_ready(preprocess(x1, min_pallas_elements=1 << 20))
    assert jnp.allclose(o5, ref_chw(x1), atol=1e-6), "mismatch (XLA fallback)"

    print("KERNEL_OK")
</pallas_src>

<mosaic_0001>
module attributes {stable_mosaic.version = 11 : i64} {
  func.func @_scale_u8_kernel(%arg0: i32, %arg1: memref<3x256xi8, #tpu.memory_space<vmem>>, %arg2: memref<3x256xf32, #tpu.memory_space<vmem>>) attributes {dimension_semantics = [#tpu.dimension_semantics<parallel>], iteration_bounds = array<i64: 1>, scalar_prefetch = 0 : i64, scratch_operands = 0 : i64, tpu.core_type = #tpu.core_type<tc>, window_params = [{transform_indices = @transform_0, window_bounds = array<i64: 3, 256>}, {transform_indices = @transform_1, window_bounds = array<i64: 3, 256>}]} {
    %c0 = arith.constant 0 : index
    %c0_0 = arith.constant 0 : index
    %0 = vector.load %arg1[%c0, %c0_0] : memref<3x256xi8, #tpu.memory_space<vmem>>, vector<3x256xi8>
    %1 = arith.uitofp %0 : vector<3x256xi8> to vector<3x256xf32>
    %cst = arith.constant 0.00392156886 : f32
    %2 = vector.broadcast %cst : f32 to vector<3x256xf32>
    %3 = arith.mulf %1, %2 : vector<3x256xf32>
    %c0_1 = arith.constant 0 : index
    %c0_2 = arith.constant 0 : index
    %4 = vector.load %arg2[%c0_1, %c0_2] : memref<3x256xf32, #tpu.memory_space<vmem>>, vector<3x256xf32>
    tpu.vector_store %arg2[%c0_1, %c0_2], %3 {strides = array<i32>} : memref<3x256xf32, #tpu.memory_space<vmem>>, vector<3x256xf32>,
    return
  }
  func.func @transform_0(%arg0: i32) -> (i32, i32) {
    %c0_i32 = arith.constant 0 : i32
    %c0_i32_0 = arith.constant 0 : i32
    return %arg0, %c0_i32 : i32, i32
  }
  func.func @transform_1(%arg0: i32) -> (i32, i32) {
    %c0_i32 = arith.constant 0 : i32
    %c0_i32_0 = arith.constant 0 : i32
    return %arg0, %c0_i32 : i32, i32
  }
}

</mosaic_0001>

<llo_original>
// kernel: tpu_custom_call.1
$region0: #{tpu_custom_call.1}
  #allocation0 [shape = 'u32[]', space=smem, size = 0x4, offset = 0x4, fixed_abs, tag = 'smem constant byte address 0x4 - core index']
  #allocation1 [shape = 'u32[144,128]{1,0:T(1,128)}', space=vmem, size = 0x12000, scoped, tag = 'internal scratch']
  %s0 = inlined_call_operand.hbm [shape: u8[3,256], index: 0, kind: input, shape index: {}]
  %s1 = inlined_call_operand.hbm [shape: f32[3,256], index: 1, kind: output, shape index: {}]
  %s2 = sld [smem:[#allocation0]]
  $region18: #{tpu_custom_call.1} parent=0
    _
  %s4 = ssub.s32 1, %s2
  %s5 = scalar_select 0, %s4, %s2
  $region1: #{tpu_custom_call.1} parent=0
    #allocation2 [shape = 'u8[1024]{0}', space=vmem, size = 0x400, scoped, tag = 'input window, operand 0, single buffered']
    #allocation3 [shape = 's32[1]{0}', space=sflag, size = 0x4, scoped, tag = 'scoped memory for tpu_custom_call.1']
    #allocation4 [shape = 's32[1]{0}', space=sflag, size = 0x4, scoped, tag = 'scoped memory for tpu_custom_call.1']
    #allocation5 [shape = 'u8[4096]{0}', space=vmem, size = 0x1000, scoped, tag = 'output window, operand 0, single buffered']
    %6 = vsyncpa [#allocation3], 0
    %7 = vsyncpa [#allocation4], 0
    // Predicated region
    $region2: #{tpu_custom_call.1} parent=1 // pred_check
      _
    $region3: #{tpu_custom_call.1} parent=1 // pred_check_branch
      %9 = sbr.rel (0) target = $region5
    $region4: #{tpu_custom_call.1} parent=1 // pred_region
      %s11 = ssub.s32 32, 32
      %12 = vsyncadd [#allocation3], %s11
      %s14 = sshll.u32 [#allocation2], 4
      %s15 = int_to_ptr.vmem [resolvable:$true] %s14
      %17 = dma.hbm_to_vmem [thread:$0]  %s0, 32, %s15, [#allocation3]
    $region5: #{tpu_custom_call.1} parent=1 // pred_fallthru
      _
    // Predicated region
    $region6: #{tpu_custom_call.1} parent=1 // pred_check
      _
    $region7: #{tpu_custom_call.1} parent=1 // pred_check_branch
      %19 = sbr.rel (0) target = $region9
    $region8: #{tpu_custom_call.1} parent=1 // pred_region
      %20 = dma.done [#allocation3], 32
    $region9: #{tpu_custom_call.1} parent=1 // pred_fallthru
      _
    %v21 = vld [vmem:[#allocation2] sm:$0x3]
    %v22 = vunpack.c.0.s8 %v21
    %v23 = vand.u32 %v22, 255
    %v24 = vcvt.s32.f32 %v23
    %v25 = vmul.f32 %v24, 0.003921569
    %26 = vst [vmem:[#allocation5] sm:$0x77] %v25
    // Predicated region
    $region10: #{tpu_custom_call.1} parent=1 // pred_check
      _
    $region11: #{tpu_custom_call.1} parent=1 // pred_check_branch
      %28 = sbr.rel (0) target = $region13
    $region12: #{tpu_custom_call.1} parent=1 // pred_region
      %s30 = ssub.s32 128, 128
      %31 = vsyncadd [#allocation4], %s30
      %s33 = sshll.u32 [#allocation5], 4
      %s34 = int_to_ptr.vmem [resolvable:$true] %s33
      %36 = dma.vmem_to_hbm [thread:$0]  %s34, 128, %s1, [#allocation4]
    $region13: #{tpu_custom_call.1} parent=1 // pred_fallthru
      _
    // Predicated region
    $region14: #{tpu_custom_call.1} parent=1 // pred_check
      _
    $region15: #{tpu_custom_call.1} parent=1 // pred_check_branch
      %38 = sbr.rel (0) target = $region17
    $region16: #{tpu_custom_call.1} parent=1 // pred_region
      %39 = dma.done [#allocation4], 128
    $region17: #{tpu_custom_call.1} parent=1 // pred_fallthru
      _
    %40 = vsyncpa [#allocation3], 1
    %41 = vsyncpa [#allocation4], 1

</llo_original>
